<compile_context>
chip_gen: v6e
topology: v6e:2x2x1
jax: 0.10.0
libtpu: 0.0.40
codegen_flags: <defaults>
</compile_context>

<pallas_src>
import functools
import math

import jax
import jax.numpy as jnp
from jax.experimental import pallas as pl
from jax.experimental.pallas import tpu as pltpu


# ----------------------------------------------------------------------------
# Parameter setup (deterministic, mirrors nn.Module __init__)
# ----------------------------------------------------------------------------
def make_positional_encoding_table(dim, max_len=5000, dtype=jnp.float32):
    position = jnp.arange(max_len, dtype=jnp.float32)[:, None]          # (max_len, 1)
    div_term = jnp.exp(
        jnp.arange(0, dim, 2, dtype=jnp.float32) * (-math.log(10000.0) / dim)
    )                                                                   # (dim/2,)
    pe = jnp.zeros((max_len, 1, dim), dtype=jnp.float32)
    pe = pe.at[:, 0, 0::2].set(jnp.sin(position * div_term))
    pe = pe.at[:, 0, 1::2].set(jnp.cos(position * div_term))
    return pe.astype(dtype)                                             # (max_len, 1, dim)


# ----------------------------------------------------------------------------
# Pallas kernels (operate on lane-dense 2-D slabs)
# ----------------------------------------------------------------------------
def _pe_row(pe_ref, batch):
    # pe block is (tS, D); replicate it along the lane axis to match the
    # flattened (tS, B*D) x block.  Concatenate lowers to a cheap XLU op.
    pe = pe_ref[...]
    if batch == 1:
        return pe
    return jnp.concatenate([pe] * batch, axis=-1)


def _pe_add_kernel(x_ref, pe_ref, o_ref, *, batch):
    # eval-mode forward: x + pe[:S]   (dropout is identity)
    o_ref[...] = x_ref[...] + _pe_row(pe_ref, batch)


def _pe_add_dropout_kernel(x_ref, pe_ref, bits_ref, o_ref, *, batch, threshold, p):
    # train-mode forward: inverted dropout, keep iff bits >= threshold
    y = x_ref[...] + _pe_row(pe_ref, batch)
    keep = bits_ref[...] >= jnp.uint32(threshold)
    scale = jnp.asarray(1.0 / (1.0 - p), dtype=y.dtype)
    o_ref[...] = jnp.where(keep, y * scale, jnp.zeros_like(y))


# ----------------------------------------------------------------------------
# Wrapper
# ----------------------------------------------------------------------------
def _pick_seq_tile(S, row_elems, itemsize, target_bytes=1 << 20):
    """Rows per block: ~1 MiB per x block, multiple of 8 (or the full S)."""
    rows = max(1, target_bytes // max(1, row_elems * itemsize))
    if rows >= S:
        return S
    return max(8, (rows // 8) * 8)


def _dropout_threshold(p):
    # P(keep) = P(bits >= t) = 1 - t / 2^32  =>  t = p * 2^32
    return min(int(round(float(p) * (1 << 32))), (1 << 32) - 1)


def positional_encoding_forward(x, pe, *, dropout_p=0.1, training=False, rng_key=None):
    """x: (S, B, D); pe: (max_len, 1, D). Returns (S, B, D) in x.dtype."""
    S, B, D = x.shape
    dtype = x.dtype

    pe_slice = pe[:S, 0, :].astype(dtype)        # (S, D)   plain-JAX glue
    x2 = x.reshape(S, B * D)                     # lane-dense slab

    itemsize = jnp.dtype(dtype).itemsize
    tS = _pick_seq_tile(S, B * D, itemsize)
    grid = (pl.cdiv(S, tS),)

    x_spec = pl.BlockSpec((tS, B * D), lambda i: (i, 0))
    pe_spec = pl.BlockSpec((tS, D), lambda i: (i, 0))
    out_spec = pl.BlockSpec((tS, B * D), lambda i: (i, 0))
    out_shape = jax.ShapeDtypeStruct((S, B * D), dtype)
    cparams = pltpu.CompilerParams(dimension_semantics=("parallel",))

    if (not training) or dropout_p <= 0.0:
        kernel = functools.partial(_pe_add_kernel, batch=B)
        out2 = pl.pallas_call(
            kernel,
            out_shape=out_shape,
            grid=grid,
            in_specs=[x_spec, pe_spec],
            out_specs=out_spec,
            compiler_params=cparams,
        )(x2, pe_slice)
    else:
        if rng_key is None:
            rng_key = jax.random.PRNGKey(0)
        bits = jax.random.bits(rng_key, (S, B * D), dtype=jnp.uint32)
        kernel = functools.partial(
            _pe_add_dropout_kernel,
            batch=B,
            threshold=_dropout_threshold(dropout_p),
            p=float(dropout_p),
        )
        out2 = pl.pallas_call(
            kernel,
            out_shape=out_shape,
            grid=grid,
            in_specs=[x_spec, pe_spec, pl.BlockSpec((tS, B * D), lambda i: (i, 0))],
            out_specs=out_spec,
            compiler_params=cparams,
        )(x2, pe_slice, bits)

    return out2.reshape(S, B, D)


# ----------------------------------------------------------------------------
# Main
# ----------------------------------------------------------------------------
if __name__ == "__main__":
    seq_len, batch, dim = 8, 2, 32
    max_len = 64  # small max_len for the demo; module default is 5000
    p = 0.1

    key = jax.random.PRNGKey(0)
    x = jax.random.normal(key, (seq_len, batch, dim), dtype=jnp.float32)
    pe = make_positional_encoding_table(dim, max_len=max_len)

    ref_eval = x + pe[:seq_len]

    # eval-mode forward (dropout = identity): verify numerically
    out_eval = positional_encoding_forward(x, pe, dropout_p=p, training=False)
    out_eval = jax.block_until_ready(out_eval)
    assert out_eval.shape == x.shape and out_eval.dtype == x.dtype
    assert jnp.allclose(out_eval, ref_eval, atol=1e-6, rtol=1e-6)

    # train-mode forward (stochastic inverted dropout): verify against the
    # exact mask reconstructed from the same deterministic bit stream.
    drop_key = jax.random.PRNGKey(42)
    out_train = positional_encoding_forward(
        x, pe, dropout_p=p, training=True, rng_key=drop_key
    )
    out_train = jax.block_until_ready(out_train)
    assert out_train.shape == x.shape
    assert bool(jnp.all(jnp.isfinite(out_train)))

    bits_ref = jax.random.bits(drop_key, (seq_len, batch * dim), dtype=jnp.uint32)
    keep_ref = (bits_ref >= jnp.uint32(_dropout_threshold(p))).reshape(x.shape)
    expected_train = jnp.where(keep_ref, ref_eval / (1.0 - p), 0.0)
    assert jnp.allclose(out_train, expected_train, atol=1e-5, rtol=1e-5)

    print("KERNEL_OK")
</pallas_src>

<mosaic_0001>
module attributes {stable_mosaic.version = 11 : i64} {
  func.func @_pe_add_kernel(%arg0: i32, %arg1: memref<8x64xf32, #tpu.memory_space<vmem>>, %arg2: memref<8x32xf32, #tpu.memory_space<vmem>>, %arg3: memref<8x64xf32, #tpu.memory_space<vmem>>) attributes {dimension_semantics = [#tpu.dimension_semantics<parallel>], iteration_bounds = array<i64: 1>, scalar_prefetch = 0 : i64, scratch_operands = 0 : i64, tpu.core_type = #tpu.core_type<tc>, window_params = [{transform_indices = @transform_0, window_bounds = array<i64: 8, 64>}, {transform_indices = @transform_1, window_bounds = array<i64: 8, 32>}, {transform_indices = @transform_2, window_bounds = array<i64: 8, 64>}]} {
    %c0 = arith.constant 0 : index
    %c0_0 = arith.constant 0 : index
    %0 = vector.load %arg1[%c0, %c0_0] : memref<8x64xf32, #tpu.memory_space<vmem>>, vector<8x64xf32>
    %c0_1 = arith.constant 0 : index
    %c0_2 = arith.constant 0 : index
    %1 = vector.load %arg2[%c0_1, %c0_2] : memref<8x32xf32, #tpu.memory_space<vmem>>, vector<8x32xf32>
    %2 = tpu.concatenate %1, %1 in 1 : vector<8x32xf32>, vector<8x32xf32> -> vector<8x64xf32>
    %3 = arith.addf %0, %2 : vector<8x64xf32>
    %c0_3 = arith.constant 0 : index
    %c0_4 = arith.constant 0 : index
    %4 = vector.load %arg3[%c0_3, %c0_4] : memref<8x64xf32, #tpu.memory_space<vmem>>, vector<8x64xf32>
    tpu.vector_store %arg3[%c0_3, %c0_4], %3 {strides = array<i32>} : memref<8x64xf32, #tpu.memory_space<vmem>>, vector<8x64xf32>,
    return
  }
  func.func @transform_0(%arg0: i32) -> (i32, i32) {
    %c0_i32 = arith.constant 0 : i32
    %c0_i32_0 = arith.constant 0 : i32
    return %arg0, %c0_i32 : i32, i32
  }
  func.func @transform_1(%arg0: i32) -> (i32, i32) {
    %c0_i32 = arith.constant 0 : i32
    %c0_i32_0 = arith.constant 0 : i32
    return %arg0, %c0_i32 : i32, i32
  }
  func.func @transform_2(%arg0: i32) -> (i32, i32) {
    %c0_i32 = arith.constant 0 : i32
    %c0_i32_0 = arith.constant 0 : i32
    return %arg0, %c0_i32 : i32, i32
  }
}

</mosaic_0001>

<llo_original>
// kernel: tpu_custom_call.1
$region0: #{tpu_custom_call.1}
  #allocation0 [shape = 'u32[]', space=smem, size = 0x4, offset = 0x4, fixed_abs, tag = 'smem constant byte address 0x4 - core index']
  #allocation1 [shape = 'u32[144,128]{1,0:T(1,128)}', space=vmem, size = 0x12000, scoped, tag = 'internal scratch']
  %s0 = inlined_call_operand.hbm [shape: f32[8,64], index: 0, kind: input, shape index: {}]
  %s1 = inlined_call_operand.hbm [shape: f32[8,32], index: 1, kind: input, shape index: {}]
  %s2 = inlined_call_operand.hbm [shape: f32[8,64], index: 2, kind: output, shape index: {}]
  %s3 = sld [smem:[#allocation0]]
  $region26: #{tpu_custom_call.1} parent=0
    _
  %s5 = ssub.s32 1, %s3
  %s6 = scalar_select 0, %s5, %s3
  $region1: #{tpu_custom_call.1} parent=0
    #allocation2 [shape = 'u8[4096]{0}', space=vmem, size = 0x1000, scoped, tag = 'input window, operand 0, single buffered']
    #allocation3 [shape = 's32[1]{0}', space=sflag, size = 0x4, scoped, tag = 'scoped memory for tpu_custom_call.1']
    #allocation4 [shape = 's32[1]{0}', space=sflag, size = 0x4, scoped, tag = 'scoped memory for tpu_custom_call.1']
    #allocation5 [shape = 'u8[4096]{0}', space=vmem, size = 0x1000, scoped, tag = 'input window, operand 1, single buffered']
    #allocation6 [shape = 's32[1]{0}', space=sflag, size = 0x4, scoped, tag = 'scoped memory for tpu_custom_call.1']
    #allocation7 [shape = 'u8[4096]{0}', space=vmem, size = 0x1000, scoped, tag = 'output window, operand 0, single buffered']
    %7 = vsyncpa [#allocation3], 0
    %8 = vsyncpa [#allocation6], 0
    %9 = vsyncpa [#allocation4], 0
    // Predicated region
    $region2: #{tpu_custom_call.1} parent=1 // pred_check
      _
    $region3: #{tpu_custom_call.1} parent=1 // pred_check_branch
      %11 = sbr.rel (0) target = $region5
    $region4: #{tpu_custom_call.1} parent=1 // pred_region
      %s13 = ssub.s32 128, 128
      %14 = vsyncadd [#allocation3], %s13
      %s16 = sshll.u32 [#allocation2], 4
      %s17 = int_to_ptr.vmem [resolvable:$true] %s16
      %19 = dma.hbm_to_vmem [thread:$0]  %s0, 128, %s17, [#allocation3]
    $region5: #{tpu_custom_call.1} parent=1 // pred_fallthru
      _
    // Predicated region
    $region6: #{tpu_custom_call.1} parent=1 // pred_check
      _
    $region7: #{tpu_custom_call.1} parent=1 // pred_check_branch
      %21 = sbr.rel (0) target = $region9
    $region8: #{tpu_custom_call.1} parent=1 // pred_region
      %s23 = ssub.s32 128, 128
      %24 = vsyncadd [#allocation6], %s23
      %s26 = sshll.u32 [#allocation5], 4
      %s27 = int_to_ptr.vmem [resolvable:$true] %s26
      %29 = dma.hbm_to_vmem [thread:$0]  %s1, 128, %s27, [#allocation6]
    $region9: #{tpu_custom_call.1} parent=1 // pred_fallthru
      _
    // Predicated region
    $region10: #{tpu_custom_call.1} parent=1 // pred_check
      _
    $region11: #{tpu_custom_call.1} parent=1 // pred_check_branch
      %31 = sbr.rel (0) target = $region13
    $region12: #{tpu_custom_call.1} parent=1 // pred_region
      %32 = dma.done [#allocation3], 128
    $region13: #{tpu_custom_call.1} parent=1 // pred_fallthru
      _
    // Predicated region
    $region14: #{tpu_custom_call.1} parent=1 // pred_check
      _
    $region15: #{tpu_custom_call.1} parent=1 // pred_check_branch
      %34 = sbr.rel (0) target = $region17
    $region16: #{tpu_custom_call.1} parent=1 // pred_region
      %35 = dma.done [#allocation6], 128
    $region17: #{tpu_custom_call.1} parent=1 // pred_fallthru
      _
    %v36 = vld [vmem:[#allocation2] sm:$0xff]
    %v37 = vld [vmem:[#allocation5] sm:$0xff]
    %39 = vrot.lane.b32.xlu0 %v37, 32
    %v40 = vpop.permute.xlu0 %39
    %vm42 = vcmask 261120
    %v43 = vsel %vm42, %v37, %v40
    %v44 = vadd.f32 %v36, %v43
    %vm45 = vcmask 523264
    %46 = vst.msk [vmem:[#allocation7] sm:$0xff] %vm45, %v44
    // Predicated region
    $region18: #{tpu_custom_call.1} parent=1 // pred_check
      _
    $region19: #{tpu_custom_call.1} parent=1 // pred_check_branch
      %48 = sbr.rel (0) target = $region21
    $region20: #{tpu_custom_call.1} parent=1 // pred_region
      %s50 = ssub.s32 128, 128
      %51 = vsyncadd [#allocation4], %s50
      %s53 = sshll.u32 [#allocation7], 4
      %s54 = int_to_ptr.vmem [resolvable:$true] %s53
      %56 = dma.vmem_to_hbm [thread:$0]  %s54, 128, %s2, [#allocation4]
    $region21: #{tpu_custom_call.1} parent=1 // pred_fallthru
      _
    // Predicated region
    $region22: #{tpu_custom_call.1} parent=1 // pred_check
      _
    $region23: #{tpu_custom_call.1} parent=1 // pred_check_branch
      %58 = sbr.rel (0) target = $region25
    $region24: #{tpu_custom_call.1} parent=1 // pred_region
      %59 = dma.done [#allocation4], 128
    $region25: #{tpu_custom_call.1} parent=1 // pred_fallthru
      _
    %60 = vsyncpa [#allocation3], 1
    %61 = vsyncpa [#allocation6], 1
    %62 = vsyncpa [#allocation4], 1

</llo_original>
